<compile_context>
chip_gen: v6e
topology: v6e:2x2x1
jax: 0.10.0
libtpu: 0.0.40
codegen_flags: <defaults>
</compile_context>

<pallas_src>
import jax
import jax.numpy as jnp
from jax import lax
from jax.experimental import pallas as pl
from jax.experimental.pallas import tpu as pltpu


# ---------------------------------------------------------------------------
# Kernels
# ---------------------------------------------------------------------------

def _layernorm_tanh(pre, gamma, beta):
    """f32 LayerNorm (eps=1e-5, one-pass stats: the two reductions overlap on
    the XLU) followed by tanh (EUP). `pre` is f32."""
    inv_h = 1.0 / pre.shape[-1]
    mean = jnp.sum(pre, axis=-1, keepdims=True) * inv_h
    mean_sq = jnp.sum(pre * pre, axis=-1, keepdims=True) * inv_h
    var = mean_sq - mean * mean
    normed = (pre - mean) * lax.rsqrt(var + 1e-5)
    return jnp.tanh(normed * gamma + beta)


def rnn_cell_kernel(x_ref, h_ref, w_in_ref, w_h_ref, gamma_ref, beta_ref, out_ref):
    # Two MXU pushes, both accumulating in f32 (K = d_in and K = H).
    pre = jnp.dot(x_ref[...], w_in_ref[...], preferred_element_type=jnp.float32)
    pre = pre + jnp.dot(h_ref[...], w_h_ref[...], preferred_element_type=jnp.float32)
    out_ref[...] = _layernorm_tanh(pre, gamma_ref[...], beta_ref[...]).astype(out_ref.dtype)


def rnn_scan_kernel(x_ref, h0_ref, w_in_ref, w_h_ref, gamma_ref, beta_ref,
                    out_ref, h_scratch):
    # Grid = (batch_tile b [parallel], timestep t [arbitrary]).
    t = pl.program_id(1)

    @pl.when(t == 0)
    def _():
        # New batch tile: load the initial hidden state into the f32 carry.
        h_scratch[...] = h0_ref[...].astype(jnp.float32)

    cd = w_h_ref.dtype                      # matmul input dtype (bf16 or f32)
    h_t = h_scratch[...]                    # carried hidden state, f32
    pre = jnp.dot(x_ref[0], w_in_ref[...], preferred_element_type=jnp.float32)
    pre = pre + jnp.dot(h_t.astype(cd), w_h_ref[...],
                        preferred_element_type=jnp.float32)
    h_new = _layernorm_tanh(pre, gamma_ref[...], beta_ref[...])
    h_scratch[...] = h_new                  # carry for t+1 (stays in VMEM)
    out_ref[0] = h_new.astype(out_ref.dtype)


# ---------------------------------------------------------------------------
# Wrappers
# ---------------------------------------------------------------------------

def prepare_rnn_cell_params(w_in, w_h, gamma, beta, *, compute_dtype=jnp.bfloat16):
    """One-time parameter layout prep (hoisted out of the per-call/per-step path).

    w_in: (H, d_in), w_h: (H, H) in PyTorch nn.Linear layout.
    Returns (w_in^T, w_h^T) as row-major (d_in,H)/(H,H) matmul operands in
    `compute_dtype`, plus gamma/beta as (1, H) f32 rows.
    """
    w_in_t = jnp.asarray(w_in).T.astype(compute_dtype)
    w_h_t = jnp.asarray(w_h).T.astype(compute_dtype)
    h = w_in_t.shape[1]
    gamma2 = jnp.asarray(gamma).reshape(1, h).astype(jnp.float32)
    beta2 = jnp.asarray(beta).reshape(1, h).astype(jnp.float32)
    return w_in_t, w_h_t, gamma2, beta2


def _pick_bm(batch):
    """Batch-tile heuristic: >=2 tiles (both v7x TensorCores) when the batch is
    big enough, capped at 512 rows; otherwise one full-batch tile (no pipeline
    overhead). Keeps tiles a multiple of 16 rows (bf16 sublane packing)."""
    if batch >= 64 and batch % 32 == 0:
        if batch > 1024 and batch % 512 == 0:
            return 512
        return batch // 2
    return batch


def rnn_cell(x, hidden, params, *, bm=None, out_dtype=None):
    """Single RNNCell forward. x: (B, d_in), hidden: (B, H) -> (B, H)."""
    w_in_t, w_h_t, gamma2, beta2 = params
    B, d_in = x.shape
    H = w_in_t.shape[1]
    cd = w_in_t.dtype
    if out_dtype is None:
        out_dtype = x.dtype

    x = x.astype(cd)
    hidden = hidden.astype(cd)

    if bm is None:
        bm = _pick_bm(B)
    assert B % bm == 0 and (bm % 8 == 0 or bm == B), "bad batch tile"
    n_steps = B // bm
    dim_sem = ("parallel",) if n_steps > 1 else ("arbitrary",)

    return pl.pallas_call(
        rnn_cell_kernel,
        out_shape=jax.ShapeDtypeStruct((B, H), out_dtype),
        grid=(n_steps,),
        in_specs=[
            pl.BlockSpec((bm, d_in), lambda i: (i, 0)),   # x tile
            pl.BlockSpec((bm, H), lambda i: (i, 0)),      # h tile
            pl.BlockSpec((d_in, H), lambda i: (0, 0)),    # W_in^T (resident)
            pl.BlockSpec((H, H), lambda i: (0, 0)),       # W_h^T  (resident)
            pl.BlockSpec((1, H), lambda i: (0, 0)),       # gamma
            pl.BlockSpec((1, H), lambda i: (0, 0)),       # beta
        ],
        out_specs=pl.BlockSpec((bm, H), lambda i: (i, 0)),
        compiler_params=pltpu.CompilerParams(dimension_semantics=dim_sem),
    )(x, hidden, w_in_t, w_h_t, gamma2, beta2)


def rnn_scan(xs, h0, params, *, bm=None, out_dtype=None):
    """Fused recurrent loop: applies the cell over xs[t], t = 0..T-1, in ONE
    pallas_call. Weights/gamma/beta stay resident in VMEM across the whole
    sequence, the hidden state lives in a VMEM scratch, only x_t is streamed in
    and h_t out per step. xs: (T, B, d_in), h0: (B, H) -> (T, B, H)."""
    w_in_t, w_h_t, gamma2, beta2 = params
    T, B, d_in = xs.shape
    H = w_in_t.shape[1]
    cd = w_in_t.dtype
    if out_dtype is None:
        out_dtype = xs.dtype

    xs = xs.astype(cd)

    if bm is None:
        bm = _pick_bm(B)
    assert B % bm == 0 and (bm % 8 == 0 or bm == B), "bad batch tile"
    n_b = B // bm

    return pl.pallas_call(
        rnn_scan_kernel,
        out_shape=jax.ShapeDtypeStruct((T, B, H), out_dtype),
        grid=(n_b, T),
        in_specs=[
            pl.BlockSpec((1, bm, d_in), lambda b, t: (t, b, 0)),  # x_t tile
            pl.BlockSpec((bm, H), lambda b, t: (b, 0)),           # h0 tile
            pl.BlockSpec((d_in, H), lambda b, t: (0, 0)),         # W_in^T (resident)
            pl.BlockSpec((H, H), lambda b, t: (0, 0)),            # W_h^T  (resident)
            pl.BlockSpec((1, H), lambda b, t: (0, 0)),            # gamma
            pl.BlockSpec((1, H), lambda b, t: (0, 0)),            # beta
        ],
        out_specs=pl.BlockSpec((1, bm, H), lambda b, t: (t, b, 0)),
        scratch_shapes=[pltpu.VMEM((bm, H), jnp.float32)],        # hidden carry
        compiler_params=pltpu.CompilerParams(
            dimension_semantics=("parallel", "arbitrary")),
    )(xs, h0, w_in_t, w_h_t, gamma2, beta2)


# ---------------------------------------------------------------------------
# Pure-JAX references (match the PyTorch forward; bias=False, so no bias term)
# ---------------------------------------------------------------------------

def rnn_cell_ref(x, hidden, w_in, w_h, gamma, beta):
    pre = x @ w_in.T + hidden @ w_h.T
    mean = jnp.mean(pre, axis=-1, keepdims=True)
    var = jnp.mean((pre - mean) ** 2, axis=-1, keepdims=True)
    normed = (pre - mean) / jnp.sqrt(var + 1e-5)
    return jnp.tanh(normed * gamma + beta)


def rnn_scan_ref(xs, h0, w_in, w_h, gamma, beta):
    def step(h, x):
        h_new = rnn_cell_ref(x, h, w_in, w_h, gamma, beta)
        return h_new, h_new
    _, hs = lax.scan(step, h0, xs)
    return hs


# ---------------------------------------------------------------------------

if __name__ == "__main__":
    # Small shapes consistent with the module: batch=16, input_size=64,
    # state_size=128, plus an 8-step sequence for the fused recurrent loop.
    B, D_IN, H, T = 16, 64, 128, 8

    key = jax.random.PRNGKey(0)
    k_x, k_h, k_win, k_wh, k_xs = jax.random.split(key, 5)

    x = jax.random.normal(k_x, (B, D_IN), dtype=jnp.float32)
    hidden = jax.random.normal(k_h, (B, H), dtype=jnp.float32)
    xs = jax.random.normal(k_xs, (T, B, D_IN), dtype=jnp.float32)

    # nn.Linear-style uniform(-1/sqrt(fan_in), 1/sqrt(fan_in)) init, LayerNorm defaults.
    bound_in = 1.0 / jnp.sqrt(jnp.float32(D_IN))
    bound_h = 1.0 / jnp.sqrt(jnp.float32(H))
    w_in = jax.random.uniform(k_win, (H, D_IN), jnp.float32, -bound_in, bound_in)
    w_h = jax.random.uniform(k_wh, (H, H), jnp.float32, -bound_h, bound_h)
    gamma = jnp.ones((H,), jnp.float32)
    beta = jnp.zeros((H,), jnp.float32)

    ref = rnn_cell_ref(x, hidden, w_in, w_h, gamma, beta)

    # --- single-step cell, bf16 MXU inputs (default), f32 LayerNorm/tanh ---
    params_bf16 = prepare_rnn_cell_params(w_in, w_h, gamma, beta)   # bf16 default
    out_bf16 = jax.block_until_ready(rnn_cell(x, hidden, params_bf16))
    assert out_bf16.shape == (B, H)
    assert jnp.allclose(out_bf16, ref, atol=2e-2, rtol=2e-2), "bf16 cell mismatch"

    # --- single-step cell, full f32 path (tight tolerance) ---
    params_f32 = prepare_rnn_cell_params(w_in, w_h, gamma, beta,
                                         compute_dtype=jnp.float32)
    out_f32 = jax.block_until_ready(rnn_cell(x, hidden, params_f32))
    assert jnp.allclose(out_f32, ref, atol=1e-5, rtol=1e-5), "f32 cell mismatch"

    # --- fused recurrent loop: one pallas_call over all T steps, weights
    #     resident, hidden carried in VMEM (f32 path for a tight check) ---
    hs = jax.block_until_ready(rnn_scan(xs, hidden, params_f32))
    hs_ref = rnn_scan_ref(xs, hidden, w_in, w_h, gamma, beta)
    assert hs.shape == (T, B, H)
    assert jnp.allclose(hs, hs_ref, atol=1e-4, rtol=1e-4), "fused scan mismatch"

    print("KERNEL_OK")
</pallas_src>

<mosaic_0001>
module attributes {stable_mosaic.version = 11 : i64} {
  func.func @rnn_cell_kernel(%arg0: i32, %arg1: memref<16x64xbf16, #tpu.memory_space<vmem>>, %arg2: memref<16x128xbf16, #tpu.memory_space<vmem>>, %arg3: memref<64x128xbf16, #tpu.memory_space<vmem>>, %arg4: memref<128x128xbf16, #tpu.memory_space<vmem>>, %arg5: memref<1x128xf32, #tpu.memory_space<vmem>>, %arg6: memref<1x128xf32, #tpu.memory_space<vmem>>, %arg7: memref<16x128xf32, #tpu.memory_space<vmem>>) attributes {dimension_semantics = [#tpu.dimension_semantics<arbitrary>], iteration_bounds = array<i64: 1>, scalar_prefetch = 0 : i64, scratch_operands = 0 : i64, tpu.core_type = #tpu.core_type<tc>, window_params = [{transform_indices = @transform_0, window_bounds = array<i64: 16, 64>}, {transform_indices = @transform_1, window_bounds = array<i64: 16, 128>}, {pipeline_mode = #tpu.pipeline_mode<synchronous>, transform_indices = @transform_2, window_bounds = array<i64: 64, 128>}, {pipeline_mode = #tpu.pipeline_mode<synchronous>, transform_indices = @transform_3, window_bounds = array<i64: 128, 128>}, {pipeline_mode = #tpu.pipeline_mode<synchronous>, transform_indices = @transform_4, window_bounds = array<i64: 1, 128>}, {pipeline_mode = #tpu.pipeline_mode<synchronous>, transform_indices = @transform_5, window_bounds = array<i64: 1, 128>}, {transform_indices = @transform_6, window_bounds = array<i64: 16, 128>}]} {
    %c0 = arith.constant 0 : index
    %c0_0 = arith.constant 0 : index
    %0 = vector.load %arg1[%c0, %c0_0] : memref<16x64xbf16, #tpu.memory_space<vmem>>, vector<16x64xbf16>
    %c0_1 = arith.constant 0 : index
    %c0_2 = arith.constant 0 : index
    %1 = vector.load %arg3[%c0_1, %c0_2] : memref<64x128xbf16, #tpu.memory_space<vmem>>, vector<64x128xbf16>
    %cst = arith.constant dense<0.000000e+00> : vector<16x128xf32>
    %2 = tpu.matmul %0, %1, %cst {dimension_numbers = #tpu.dot_dimension_numbers<[1], [0], [0], [1], [0, 0, 1, 1], [], []>} : vector<16x64xbf16>, vector<64x128xbf16>, vector<16x128xf32> -> vector<16x128xf32>
    %c0_3 = arith.constant 0 : index
    %c0_4 = arith.constant 0 : index
    %3 = vector.load %arg2[%c0_3, %c0_4] : memref<16x128xbf16, #tpu.memory_space<vmem>>, vector<16x128xbf16>
    %c0_5 = arith.constant 0 : index
    %c0_6 = arith.constant 0 : index
    %4 = vector.load %arg4[%c0_5, %c0_6] : memref<128x128xbf16, #tpu.memory_space<vmem>>, vector<128x128xbf16>
    %cst_7 = arith.constant dense<0.000000e+00> : vector<16x128xf32>
    %5 = tpu.matmul %3, %4, %cst_7 {dimension_numbers = #tpu.dot_dimension_numbers<[1], [0], [0], [1], [0, 0, 1, 1], [], []>} : vector<16x128xbf16>, vector<128x128xbf16>, vector<16x128xf32> -> vector<16x128xf32>
    %6 = arith.addf %2, %5 : vector<16x128xf32>
    %c0_8 = arith.constant 0 : index
    %c0_9 = arith.constant 0 : index
    %7 = vector.load %arg5[%c0_8, %c0_9] : memref<1x128xf32, #tpu.memory_space<vmem>>, vector<1x128xf32>
    %c0_10 = arith.constant 0 : index
    %c0_11 = arith.constant 0 : index
    %8 = vector.load %arg6[%c0_10, %c0_11] : memref<1x128xf32, #tpu.memory_space<vmem>>, vector<1x128xf32>
    %cst_12 = arith.constant dense<0.000000e+00> : vector<16xf32>
    %9 = vector.multi_reduction <add>, %6, %cst_12 [1] : vector<16x128xf32> to vector<16xf32>
    %10 = vector.shape_cast %9 : vector<16xf32> to vector<16x1xf32>
    %cst_13 = arith.constant 7.812500e-03 : f32
    %11 = vector.broadcast %cst_13 : f32 to vector<16x1xf32>
    %12 = arith.mulf %10, %11 : vector<16x1xf32>
    %13 = arith.mulf %6, %6 : vector<16x128xf32>
    %cst_14 = arith.constant dense<0.000000e+00> : vector<16xf32>
    %14 = vector.multi_reduction <add>, %13, %cst_14 [1] : vector<16x128xf32> to vector<16xf32>
    %15 = vector.shape_cast %14 : vector<16xf32> to vector<16x1xf32>
    %cst_15 = arith.constant 7.812500e-03 : f32
    %16 = vector.broadcast %cst_15 : f32 to vector<16x1xf32>
    %17 = arith.mulf %15, %16 : vector<16x1xf32>
    %18 = arith.mulf %12, %12 : vector<16x1xf32>
    %19 = arith.subf %17, %18 : vector<16x1xf32>
    %20 = vector.broadcast %12 : vector<16x1xf32> to vector<16x128xf32>
    %21 = arith.subf %6, %20 : vector<16x128xf32>
    %cst_16 = arith.constant 9.99999974E-6 : f32
    %22 = vector.broadcast %cst_16 : f32 to vector<16x1xf32>
    %23 = arith.addf %19, %22 : vector<16x1xf32>
    %24 = math.rsqrt %23 : vector<16x1xf32>
    %25 = vector.broadcast %24 : vector<16x1xf32> to vector<16x128xf32>
    %26 = arith.mulf %21, %25 : vector<16x128xf32>
    %27 = vector.broadcast %7 : vector<1x128xf32> to vector<16x128xf32>
    %28 = arith.mulf %26, %27 : vector<16x128xf32>
    %29 = vector.broadcast %8 : vector<1x128xf32> to vector<16x128xf32>
    %30 = arith.addf %28, %29 : vector<16x128xf32>
    %31 = math.tanh %30 : vector<16x128xf32>
    %c0_17 = arith.constant 0 : index
    %c0_18 = arith.constant 0 : index
    %32 = vector.load %arg7[%c0_17, %c0_18] : memref<16x128xf32, #tpu.memory_space<vmem>>, vector<16x128xf32>
    tpu.vector_store %arg7[%c0_17, %c0_18], %31 {strides = array<i32>} : memref<16x128xf32, #tpu.memory_space<vmem>>, vector<16x128xf32>,
    return
  }
  func.func @transform_0(%arg0: i32) -> (i32, i32) {
    %c0_i32 = arith.constant 0 : i32
    %c0_i32_0 = arith.constant 0 : i32
    return %arg0, %c0_i32 : i32, i32
  }
  func.func @transform_1(%arg0: i32) -> (i32, i32) {
    %c0_i32 = arith.constant 0 : i32
    %c0_i32_0 = arith.constant 0 : i32
    return %arg0, %c0_i32 : i32, i32
  }
  func.func @transform_2(%arg0: i32) -> (i32, i32) {
    %c0_i32 = arith.constant 0 : i32
    %c0_i32_0 = arith.constant 0 : i32
    %c0_i32_1 = arith.constant 0 : i32
    return %c0_i32, %c0_i32_0 : i32, i32
  }
  func.func @transform_3(%arg0: i32) -> (i32, i32) {
    %c0_i32 = arith.constant 0 : i32
    %c0_i32_0 = arith.constant 0 : i32
    %c0_i32_1 = arith.constant 0 : i32
    return %c0_i32, %c0_i32_0 : i32, i32
  }
  func.func @transform_4(%arg0: i32) -> (i32, i32) {
    %c0_i32 = arith.constant 0 : i32
    %c0_i32_0 = arith.constant 0 : i32
    %c0_i32_1 = arith.constant 0 : i32
    return %c0_i32, %c0_i32_0 : i32, i32
  }
  func.func @transform_5(%arg0: i32) -> (i32, i32) {
    %c0_i32 = arith.constant 0 : i32
    %c0_i32_0 = arith.constant 0 : i32
    %c0_i32_1 = arith.constant 0 : i32
    return %c0_i32, %c0_i32_0 : i32, i32
  }
  func.func @transform_6(%arg0: i32) -> (i32, i32) {
    %c0_i32 = arith.constant 0 : i32
    %c0_i32_0 = arith.constant 0 : i32
    return %arg0, %c0_i32 : i32, i32
  }
}

</mosaic_0001>

<llo_original>
// kernel: tpu_custom_call.1
$region0: #{tpu_custom_call.1}
  #allocation0 [shape = 'u32[]', space=smem, size = 0x4, offset = 0x4, fixed_abs, tag = 'smem constant byte address 0x4 - core index']
  #allocation1 [shape = 'u32[144,128]{1,0:T(1,128)}', space=vmem, size = 0x12000, scoped, tag = 'internal scratch']
  %s0 = inlined_call_operand.hbm [shape: bf16[16,64], index: 0, kind: input, shape index: {}]
  %s1 = inlined_call_operand.hbm [shape: bf16[16,128], index: 1, kind: input, shape index: {}]
  %s2 = inlined_call_operand.hbm [shape: bf16[64,128], index: 2, kind: input, shape index: {}]
  %s3 = inlined_call_operand.hbm [shape: bf16[128,128], index: 3, kind: input, shape index: {}]
  %s4 = inlined_call_operand.vmem [shape: f32[1,128], index: 4, kind: input, shape index: {}]
  %s5 = inlined_call_operand.vmem [shape: f32[1,128], index: 5, kind: input, shape index: {}]
  %s6 = inlined_call_operand.hbm [shape: f32[16,128], index: 6, kind: output, shape index: {}]
  %s7 = sld [smem:[#allocation0]]
  $region50: #{tpu_custom_call.1} parent=0
    _
  %s9 = ssub.s32 1, %s7
  %s10 = scalar_select 0, %s9, %s7
  $region1: #{tpu_custom_call.1} parent=0
    #allocation2 [shape = 'u8[4096]{0}', space=vmem, size = 0x1000, scoped, tag = 'input window, operand 0, single buffered']
    #allocation3 [shape = 's32[1]{0}', space=sflag, size = 0x4, scoped, tag = 'scoped memory for tpu_custom_call.1']
    #allocation4 [shape = 's32[1]{0}', space=sflag, size = 0x4, scoped, tag = 'scoped memory for tpu_custom_call.1']
    #allocation5 [shape = 'u8[4096]{0}', space=vmem, size = 0x1000, scoped, tag = 'input window, operand 1, single buffered']
    #allocation6 [shape = 's32[1]{0}', space=sflag, size = 0x4, scoped, tag = 'scoped memory for tpu_custom_call.1']
    #allocation7 [shape = 'u8[16384]{0}', space=vmem, size = 0x4000, scoped, tag = 'input window, operand 2, single buffered']
    #allocation8 [shape = 'u8[32768]{0}', space=vmem, size = 0x8000, scoped, tag = 'input window, operand 3, single buffered']
    #allocation9 [shape = 's32[1]{0}', space=sflag, size = 0x4, scoped, tag = 'scoped memory for tpu_custom_call.1']
    #allocation10 [shape = 'u8[8192]{0}', space=vmem, size = 0x2000, scoped, tag = 'output window, operand 0, single buffered']
    %11 = vsyncpa [#allocation3], 0
    %12 = vsyncpa [#allocation6], 0
    %13 = vsyncpa [#allocation9], 0
    %14 = vsyncpa [#allocation4], 0
    // Predicated region
    $region2: #{tpu_custom_call.1} parent=1 // pred_check
      _
    $region3: #{tpu_custom_call.1} parent=1 // pred_check_branch
      %16 = sbr.rel (0) target = $region5
    $region4: #{tpu_custom_call.1} parent=1 // pred_region
      %s18 = ssub.s32 128, 128
      %19 = vsyncadd [#allocation3], %s18
      %s20 = sshll.u32 [#allocation2], 4
      %s21 = int_to_ptr.vmem [resolvable:$true] %s20
      %26 = dma.hbm_to_vmem [thread:$0]  %s0, 128, %s21, [#allocation3], 64, 64, 4
    $region5: #{tpu_custom_call.1} parent=1 // pred_fallthru
      _
    // Predicated region
    $region6: #{tpu_custom_call.1} parent=1 // pred_check
      _
    $region7: #{tpu_custom_call.1} parent=1 // pred_check_branch
      %28 = sbr.rel (0) target = $region9
    $region8: #{tpu_custom_call.1} parent=1 // pred_region
      %s30 = ssub.s32 128, 128
      %31 = vsyncadd [#allocation6], %s30
      %s32 = sshll.u32 [#allocation5], 4
      %s33 = int_to_ptr.vmem [resolvable:$true] %s32
      %38 = dma.hbm_to_vmem [thread:$0]  %s1, 128, %s33, [#allocation6], 64, 64, 4
    $region9: #{tpu_custom_call.1} parent=1 // pred_fallthru
      _
    // Predicated region
    $region10: #{tpu_custom_call.1} parent=1 // pred_check
      _
    $region11: #{tpu_custom_call.1} parent=1 // pred_check_branch
      %40 = sbr.rel (0) target = $region13
    $region12: #{tpu_custom_call.1} parent=1 // pred_region
      %s42 = ssub.s32 512, 512
      %43 = vsyncadd [#allocation6], %s42
      %s44 = sshll.u32 [#allocation7], 4
      %s45 = int_to_ptr.vmem [resolvable:$true] %s44
      %50 = dma.hbm_to_vmem [thread:$0]  %s2, 512, %s45, [#allocation6], 64, 64, 4
    $region13: #{tpu_custom_call.1} parent=1 // pred_fallthru
      _
    // Predicated region
    $region14: #{tpu_custom_call.1} parent=1 // pred_check
      _
    $region15: #{tpu_custom_call.1} parent=1 // pred_check_branch
      %52 = sbr.rel (0) target = $region17
    $region16: #{tpu_custom_call.1} parent=1 // pred_region
      %s54 = ssub.s32 1024, 1024
      %55 = vsyncadd [#allocation9], %s54
      %s56 = sshll.u32 [#allocation8], 4
      %s57 = int_to_ptr.vmem [resolvable:$true] %s56
      %62 = dma.hbm_to_vmem [thread:$0]  %s3, 1024, %s57, [#allocation9], 64, 64, 4
    $region17: #{tpu_custom_call.1} parent=1 // pred_fallthru
      _
    // Predicated region
    $region18: #{tpu_custom_call.1} parent=1 // pred_check
      _
    $region19: #{tpu_custom_call.1} parent=1 // pred_check_branch
      %64 = sbr.rel (0) target = $region21
    $region20: #{tpu_custom_call.1} parent=1 // pred_region
      _
    $region21: #{tpu_custom_call.1} parent=1 // pred_fallthru
      _
    // Predicated region
    $region22: #{tpu_custom_call.1} parent=1 // pred_check
      _
    $region23: #{tpu_custom_call.1} parent=1 // pred_check_branch
      %66 = sbr.rel (0) target = $region25
    $region24: #{tpu_custom_call.1} parent=1 // pred_region
      _
    $region25: #{tpu_custom_call.1} parent=1 // pred_fallthru
      _
    // Predicated region
    $region26: #{tpu_custom_call.1} parent=1 // pred_check
      _
    $region27: #{tpu_custom_call.1} parent=1 // pred_check_branch
      %68 = sbr.rel (0) target = $region29
    $region28: #{tpu_custom_call.1} parent=1 // pred_region
      %69 = dma.done [#allocation3], 128
    $region29: #{tpu_custom_call.1} parent=1 // pred_fallthru
      _
    // Predicated region
    $region30: #{tpu_custom_call.1} parent=1 // pred_check
      _
    $region31: #{tpu_custom_call.1} parent=1 // pred_check_branch
      %71 = sbr.rel (0) target = $region33
    $region32: #{tpu_custom_call.1} parent=1 // pred_region
      %72 = dma.done [#allocation6], 128
    $region33: #{tpu_custom_call.1} parent=1 // pred_fallthru
      _
    // Predicated region
    $region34: #{tpu_custom_call.1} parent=1 // pred_check
      _
    $region35: #{tpu_custom_call.1} parent=1 // pred_check_branch
      %74 = sbr.rel (0) target = $region37
    $region36: #{tpu_custom_call.1} parent=1 // pred_region
      %75 = dma.done [#allocation6], 512
    $region37: #{tpu_custom_call.1} parent=1 // pred_fallthru
      _
    // Predicated region
    $region38: #{tpu_custom_call.1} parent=1 // pred_check
      _
    $region39: #{tpu_custom_call.1} parent=1 // pred_check_branch
      %77 = sbr.rel (0) target = $region41
    $region40: #{tpu_custom_call.1} parent=1 // pred_region
      %78 = dma.done [#allocation9], 1024
    $region41: #{tpu_custom_call.1} parent=1 // pred_fallthru
      _
    %v80 = vld [vmem:[#allocation2] sm:$0xf]
    %v81 = vld [vmem:[#allocation2 + $0x4] sm:$0xf]
    %v82 = vld [vmem:[#allocation7] sm:$0xf]
    %v83 = vld [vmem:[#allocation7 + $0x4] sm:$0xf]
    %v84 = vld [vmem:[#allocation7 + $0x8] sm:$0xf]
    %v85 = vld [vmem:[#allocation7 + $0xc] sm:$0xf]
    %v86 = vld [vmem:[#allocation7 + $0x10] sm:$0xf]
    %v87 = vld [vmem:[#allocation7 + $0x14] sm:$0xf]
    %v88 = vld [vmem:[#allocation7 + $0x18] sm:$0xf]
    %v89 = vld [vmem:[#allocation7 + $0x1c] sm:$0xf]
    %v90 = vld [vmem:[#allocation5] sm:$0xf]
    %v91 = vld [vmem:[#allocation5 + $0x4] sm:$0xf]
    %v92 = vld [vmem:[#allocation8] sm:$0xf]
    %v93 = vld [vmem:[#allocation8 + $0x4] sm:$0xf]
    %v94 = vld [vmem:[#allocation8 + $0x8] sm:$0xf]
    %v95 = vld [vmem:[#allocation8 + $0xc] sm:$0xf]
    %v96 = vld [vmem:[#allocation8 + $0x10] sm:$0xf]
    %v97 = vld [vmem:[#allocation8 + $0x14] sm:$0xf]
    %v98 = vld [vmem:[#allocation8 + $0x18] sm:$0xf]
    %v99 = vld [vmem:[#allocation8 + $0x1c] sm:$0xf]
    %v100 = vld [vmem:[#allocation8 + $0x20] sm:$0xf]
    %v101 = vld [vmem:[#allocation8 + $0x24] sm:$0xf]
    %v102 = vld [vmem:[#allocation8 + $0x28] sm:$0xf]
    %v103 = vld [vmem:[#allocation8 + $0x2c] sm:$0xf]
    %v104 = vld [vmem:[#allocation8 + $0x30] sm:$0xf]
    %v105 = vld [vmem:[#allocation8 + $0x34] sm:$0xf]
    %v106 = vld [vmem:[#allocation8 + $0x38] sm:$0xf]
    %v107 = vld [vmem:[#allocation8 + $0x3c] sm:$0xf]
    %v110 = vunpack.c.l.b16 %v90
    %v111 = vunpack.c.l.b16 %v91
    %v112 = vpack.c.b16 %v111, %v110
    %v130 = vunpack.c.l.b16 %v92
    %v131 = vunpack.c.l.b16 %v93
    %v132 = vunpack.c.l.b16 %v94
    %v133 = vunpack.c.l.b16 %v95
    %v134 = vunpack.c.l.b16 %v96
    %v135 = vunpack.c.l.b16 %v97
    %v136 = vunpack.c.l.b16 %v98
    %v137 = vunpack.c.l.b16 %v99
    %v138 = vunpack.c.l.b16 %v100
    %v139 = vunpack.c.l.b16 %v101
    %v140 = vunpack.c.l.b16 %v102
    %v141 = vunpack.c.l.b16 %v103
    %v142 = vunpack.c.l.b16 %v104
    %v143 = vunpack.c.l.b16 %v105
    %v144 = vunpack.c.l.b16 %v106
    %v145 = vunpack.c.l.b16 %v107
    %v146 = vpack.c.b16 %v131, %v130
    %v147 = vpack.c.b16 %v133, %v132
    %v148 = vpack.c.b16 %v135, %v134
    %v149 = vpack.c.b16 %v137, %v136
    %v150 = vpack.c.b16 %v139, %v138
    %v151 = vpack.c.b16 %v141, %v140
    %v152 = vpack.c.b16 %v143, %v142
    %v153 = vpack.c.b16 %v145, %v144
    %162 = vmatprep.subr.bf16.mxu0 0
    %163 = vmatpush1.bf16.msra.mxu0 %v153
    %164 = vmatprep.subr.bf16.mxu0 0
    %165 = vmatpush1.bf16.msra.mxu0 %v152
    %166 = vmatprep.subr.bf16.mxu0 0
    %167 = vmatpush1.bf16.msra.mxu0 %v151
    %168 = vmatprep.subr.bf16.mxu0 0
    %169 = vmatpush1.bf16.msra.mxu0 %v150
    %170 = vmatprep.subr.bf16.mxu0 0
    %171 = vmatpush1.bf16.msra.mxu0 %v149
    %172 = vmatprep.subr.bf16.mxu0 0
    %173 = vmatpush1.bf16.msra.mxu0 %v148
    %174 = vmatprep.subr.bf16.mxu0 0
    %175 = vmatpush1.bf16.msra.mxu0 %v147
    %176 = vmatprep.subr.bf16.mxu0 0
    %177 = vmatpush1.bf16.msra.mxu0 %v146
    %178 = vmatprep.subr.bf16.mxu0 0
    %179 = vmatpush2.bf16.msra.mxu0 0
    %180 = vmatprep.subr.bf16.mxu0 0
    %181 = vmatpush2.bf16.msra.mxu0 0
    %182 = vmatprep.subr.bf16.mxu0 0
    %183 = vmatpush2.bf16.msra.mxu0 0
    %184 = vmatprep.subr.bf16.mxu0 0
    %185 = vmatpush2.bf16.msra.mxu0 0
    %186 = vmatprep.subr.bf16.mxu0 0
    %187 = vmatpush2.bf16.msra.mxu0 0
    %188 = vmatprep.subr.bf16.mxu0 0
    %189 = vmatpush2.bf16.msra.mxu0 0
    %190 = vmatprep.subr.bf16.mxu0 0
    %191 = vmatpush2.bf16.msra.mxu0 0
    %192 = vmatprep.subr.bf16.mxu0 0
    %193 = vmatpush2.bf16.msra.mxu0 0
    %194 = vmatprep.mubr.bf16.mxu0 0
    %195 = vmatmul.mubr.bf16.gmra.mxu0 %v112
    %v196 = vpop.f32.mrf.mxu0
    %v197 = vadd.f32 0.0, %v196
    %v198 = vpop.f32.mrf.mxu0
    %v199 = vpop.f32.mrf.mxu0
    %v200 = vadd.f32 0.0, %v199
    %v201 = vpop.f32.mrf.mxu0
    %202 = vdwg.mxu0
    %v205 = vunpack.c.l.b16 %v80
    %v206 = vunpack.c.l.b16 %v81
    %v207 = vpack.c.b16 %v206, %v205
    %v216 = vunpack.c.l.b16 %v82
    %v217 = vunpack.c.l.b16 %v83
    %v218 = vunpack.c.l.b16 %v84
    %v219 = vunpack.c.l.b16 %v85
    %v220 = vunpack.c.l.b16 %v86
    %v221 = vunpack.c.l.b16 %v87
    %v222 = vunpack.c.l.b16 %v88
    %v223 = vunpack.c.l.b16 %v89
    %v224 = vpack.c.b16 %v217, %v216
    %v225 = vpack.c.b16 %v219, %v218
    %v226 = vpack.c.b16 %v221, %v220
    %v227 = vpack.c.b16 %v223, %v222
    %vm232 = vcmask 523264
    %v234 = vsel %vm232, %v207, 0
    %236 = vmatprep.subr.bf16.mxu0 0
    %237 = vmatpush1.bf16.msra.mxu0 0
    %238 = vmatprep.subr.bf16.mxu0 0
    %239 = vmatpush1.bf16.msra.mxu0 0
    %240 = vmatprep.subr.bf16.mxu0 0
    %241 = vmatpush1.bf16.msra.mxu0 0
    %242 = vmatprep.subr.bf16.mxu0 0
    %243 = vmatpush1.bf16.msra.mxu0 0
    %244 = vmatprep.subr.bf16.mxu0 0
    %245 = vmatpush1.bf16.msra.mxu0 %v227
    %246 = vmatprep.subr.bf16.mxu0 0
    %247 = vmatpush1.bf16.msra.mxu0 %v226
    %248 = vmatprep.subr.bf16.mxu0 0
    %249 = vmatpush1.bf16.msra.mxu0 %v225
    %250 = vmatprep.subr.bf16.mxu0 0
    %251 = vmatpush1.bf16.msra.mxu0 %v224
    %252 = vmatprep.subr.bf16.mxu0 0
    %253 = vmatpush2.bf16.msra.mxu0 0
    %254 = vmatprep.subr.bf16.mxu0 0
    %255 = vmatpush2.bf16.msra.mxu0 0
    %256 = vmatprep.subr.bf16.mxu0 0
    %257 = vmatpush2.bf16.msra.mxu0 0
    %258 = vmatprep.subr.bf16.mxu0 0
    %259 = vmatpush2.bf16.msra.mxu0 0
    %260 = vmatprep.subr.bf16.mxu0 0
    %261 = vmatpush2.bf16.msra.mxu0 0
    %262 = vmatprep.subr.bf16.mxu0 0
    %263 = vmatpush2.bf16.msra.mxu0 0
    %264 = vmatprep.subr.bf16.mxu0 0
    %265 = vmatpush2.bf16.msra.mxu0 0
    %266 = vmatprep.subr.bf16.mxu0 0
    %267 = vmatpush2.bf16.msra.mxu0 0
    %268 = vmatprep.mubr.bf16.mxu0 0
    %269 = vmatmul.mubr.bf16.gmra.mxu0 %v234
    %v270 = vpop.f32.mrf.mxu0
    %v271 = vadd.f32 %v197, %v270
    %v272 = vpop.f32.mrf.mxu0
    %v273 = vpop.f32.mrf.mxu0
    %v274 = vadd.f32 %v200, %v273
    %v275 = vpop.f32.mrf.mxu0
    %276 = vdwg.mxu0
    %v277 = vld [vmem:[%s4] sm:$0x1]
    %v278 = vld [vmem:[%s5] sm:$0x1]
    %279 = vadd.xlane.f32.xlu0 %v271
    %v280 = vpop.xlane.xlu0 %279
    %281 = vadd.xlane.f32.xlu0 %v274
    %v282 = vpop.xlane.xlu0 %281
    %v283 = vmul.f32 %v280, 0.0078125
    %v284 = vmul.f32 %v282, 0.0078125
    %v285 = vmul.f32 %v271, %v271
    %v286 = vmul.f32 %v274, %v274
    %287 = vadd.xlane.f32.xlu0 %v285
    %v288 = vpop.xlane.xlu0 %287
    %289 = vadd.xlane.f32.xlu0 %v286
    %v290 = vpop.xlane.xlu0 %289
    %v291 = vmul.f32 %v288, 0.0078125
    %v292 = vmul.f32 %v290, 0.0078125
    %v293 = vmul.f32 %v283, %v283
    %v294 = vmul.f32 %v284, %v284
    %v295 = vsub.f32 %v291, %v293
    %v296 = vsub.f32 %v292, %v294
    %v297 = vsub.f32 %v271, %v283
    %v298 = vsub.f32 %v274, %v284
    %v299 = vadd.f32 %v295, 1e-05
    %v300 = vadd.f32 %v296, 1e-05
    %v301 = vrsqrt.pop %v299
    %v302 = vrsqrt.pop %v300
    %v303 = vmul.f32 %v297, %v301
    %v304 = vmul.f32 %v298, %v302
    %v306 = vlaneseq
    %v307 = vshrl.u32 %v306, 7
    %v308 = vsub.s32 0, %v307
    %v309 = vrot.slane %v277, %v308
    %v311 = vmul.f32 %v303, %v309
    %v312 = vmul.f32 %v304, %v309
    %v314 = vlaneseq
    %v315 = vshrl.u32 %v314, 7
    %v316 = vsub.s32 0, %v315
    %v317 = vrot.slane %v278, %v316
    %v319 = vadd.f32 %v311, %v317
    %v320 = vadd.f32 %v312, %v317
    %v321 = vtanh.pop %v319
    %v322 = vtanh.pop %v320
    %323 = vst [vmem:[#allocation10] sm:$0xff] %v321
    %324 = vst [vmem:[#allocation10 + $0x8] sm:$0xff] %v322
    // Predicated region
    $region42: #{tpu_custom_call.1} parent=1 // pred_check
      _
    $region43: #{tpu_custom_call.1} parent=1 // pred_check_branch
      %326 = sbr.rel (0) target = $region45
    $region44: #{tpu_custom_call.1} parent=1 // pred_region
      %s328 = ssub.s32 256, 256
      %329 = vsyncadd [#allocation4], %s328
      %s330 = sshll.u32 [#allocation10], 4
      %s331 = int_to_ptr.vmem [resolvable:$true] %s330
      %336 = dma.vmem_to_hbm [thread:$0]  %s331, 256, %s6, [#allocation4], 128, 128, 8
    $region45: #{tpu_custom_call.1} parent=1 // pred_fallthru
      _
    // Predicated region
    $region46: #{tpu_custom_call.1} parent=1 // pred_check
      _
    $region47: #{tpu_custom_call.1} parent=1 // pred_check_branch
      %338 = sbr.rel (0) target = $region49
    $region48: #{tpu_custom_call.1} parent=1 // pred_region
      %339 = dma.done [#allocation4], 256
    $region49: #{tpu_custom_call.1} parent=1 // pred_fallthru
      _
    %340 = vsyncpa [#allocation3], 1
    %341 = vsyncpa [#allocation6], 1
    %342 = vsyncpa [#allocation9], 1
    %343 = vsyncpa [#allocation4], 1

</llo_original>
